<compile_context>
chip_gen: v7x
topology: tpu7x:2x2x1
jax: 0.10.0
libtpu: 0.0.40
codegen_flags: <defaults>
</compile_context>

<pallas_src>
import functools

import numpy as np
import jax
import jax.numpy as jnp
from jax.experimental import pallas as pl
from jax.experimental.pallas import tpu as pltpu


# ---------------------------------------------------------------------------
# Parameter construction (mirrors MR.__init__ exactly, in numpy)
# ---------------------------------------------------------------------------
def build_unit_mapping(unit_count: int, task_count: int, sigma: float,
                       seed: int = 0) -> np.ndarray:
    np.random.seed(seed)  # deterministic (only used if the fill loop triggers)
    sigma = 1.0 - sigma
    if sigma == 0:
        unit_mapping = np.ones((task_count, unit_count), dtype=np.float32)
    else:
        unit_mapping = np.eye(task_count, unit_count, dtype=np.float32)
        idx = task_count
        while False in (np.sum(unit_mapping, axis=0) > 0).tolist():
            unit_mapping += np.eye(task_count, unit_count, idx, dtype=np.float32)
            idx += task_count
        for k in range(task_count):
            rep = np.sum(unit_mapping[k, :] == 0) / unit_count
            while rep > sigma:
                free_idx = np.where(unit_mapping[k, :] == 0)[0]
                unit_mapping[k, free_idx[np.random.randint(0, len(free_idx))]] = 1
                rep = np.sum(unit_mapping[k, :] == 0) / unit_count
    return unit_mapping


# ---------------------------------------------------------------------------
# Pallas kernel: per-channel mask multiply on 4-D (N, C, H, W) blocks
# ---------------------------------------------------------------------------
def mr_kernel(task_ref, x_ref, m_ref, o_ref):
    # task_ref: SMEM scalar-prefetch ref, only consumed by the index_maps.
    # x_ref:    (bn, c_t, h_t, W) block of the input.
    # m_ref:    (1, c_t, 1, 1) active task's per-channel mask.
    # o_ref:    (bn, c_t, h_t, W) output block.
    del task_ref
    o_ref[...] = x_ref[...] * m_ref[...]


# ---------------------------------------------------------------------------
# Tiling / VMEM heuristics
# ---------------------------------------------------------------------------
def _rup(x, m):
    return ((x + m - 1) // m) * m


def _largest_divisor_leq(n, cap):
    cap = int(max(1, min(n, cap)))
    for d in range(cap, 0, -1):
        if n % d == 0:
            return d
    return 1


def _largest_packed_divisor_leq(n, cap, step):
    """Largest divisor of n that is a multiple of `step` and <= cap (or None)."""
    best = None
    d = step
    lim = min(n, int(cap))
    while d <= lim:
        if n % d == 0:
            best = d
        d += step
    return best


_VMEM_CONFIG = None


def _vmem_config():
    """Returns (physical_vmem_bytes, default_scoped_limit, likely_two_tensorcores)."""
    global _VMEM_CONFIG
    if _VMEM_CONFIG is None:
        phys = 0
        try:
            info = pltpu.get_tpu_info()
            phys = int(getattr(info, "vmem_capacity_bytes", 0) or 0)
        except Exception:
            phys = 0
        if phys <= 0:
            phys = 64 * 1024 * 1024            # conservative default (v7x-sized)
        if phys >= 128 * 1024 * 1024:          # v5e / v6e: 128 MiB VMEM, 1 TC
            scoped = 100 * 1024 * 1024
            two_cores = False
        else:                                  # v7x: 64 MiB VMEM, 2 TCs
            scoped = 48 * 1024 * 1024
            two_cores = True
        _VMEM_CONFIG = (phys, scoped, two_cores)
    return _VMEM_CONFIG


def _choose_tiles(N, C, H, W, itemsize, usable_bytes, force_two_steps):
    """Pick (bn, c_t, h_t) so the padded, double-buffered footprint fits."""
    sub = {4: 8, 2: 16, 1: 32}.get(itemsize, 8)    # sublane packing of dtype
    w_pad = _rup(W, 128)
    h_pad = _rup(H, sub)
    slice_bytes = h_pad * w_pad * itemsize          # one (n, c) spatial slice in VMEM
    mask_chan = 2 * sub * 128 * itemsize            # double-buffered mask tile / channel

    # 2x(in) + 2x(out) double-buffering + mask, per channel.
    per_chan = 4 * slice_bytes + mask_chan
    c_t = _largest_divisor_leq(C, usable_bytes // max(1, per_chan))

    h_t = H
    if c_t == 1 and per_chan > usable_bytes and H > sub:
        # Even one (n, c, H, W) slice blows the budget: tile H in sublane-packing
        # multiples (still a legal block shape since W stays full).
        cap_rows = (usable_bytes - mask_chan) // max(1, 4 * w_pad * itemsize)
        cand = _largest_packed_divisor_leq(H, cap_rows, sub)
        if cand is not None:
            h_t = cand
        # TODO(synk): add W-axis (128-lane) tiling for the corner case where H
        # is not a multiple of the sublane packing and one slice is huge; the
        # current fallback just raises the scoped VMEM limit towards physical.

    bn = 1
    if c_t == C and h_t == H:
        rem = max(1, usable_bytes - C * mask_chan)
        bn = _largest_divisor_leq(N, rem // max(1, 4 * C * slice_bytes))

    # Two-TensorCore chips (v7x): guarantee >= 2 steps on a parallel grid axis.
    steps = (N // bn) * (C // c_t) * (H // h_t)
    if force_two_steps and steps < 2:
        if N >= 2:
            bn = _largest_divisor_leq(N, N // 2)
        elif C >= 2:
            c_t = _largest_divisor_leq(C, C // 2)
        elif h_t == H and H % (2 * sub) == 0:
            h_t = H // 2
    return bn, c_t, h_t, sub


# ---------------------------------------------------------------------------
# Forward wrapper
# ---------------------------------------------------------------------------
@jax.jit
def mr_forward(x: jax.Array, unit_mapping: jax.Array, active_task) -> jax.Array:
    """x: (N, C, H, W); unit_mapping: (T, C); active_task: int / int32 scalar."""
    N, C, H, W = x.shape
    T = unit_mapping.shape[0]
    itemsize = jnp.dtype(x.dtype).itemsize

    phys, scoped, two_cores = _vmem_config()
    usable = max(scoped - 6 * 1024 * 1024, 4 * 1024 * 1024)
    bn, c_t, h_t, sub = _choose_tiles(N, C, H, W, itemsize, usable, two_cores)

    # Actual padded, double-buffered footprint of the chosen tiling; raise the
    # scoped VMEM limit (toward physical) if an awkward shape forced a big block.
    block_bytes = bn * c_t * _rup(h_t, sub) * _rup(W, 128) * itemsize
    mask_bytes = 2 * c_t * sub * 128 * itemsize
    need = 4 * block_bytes + mask_bytes + 4 * 1024 * 1024
    vmem_limit = int(min(max(scoped, need), phys - 2 * 1024 * 1024))

    # Mask as (T, C, 1, 1): channel on a leading dim, trivial (1,1) tiled dims.
    mapping4d = unit_mapping.astype(x.dtype).reshape(T, C, 1, 1)
    # Active task index as a scalar-prefetch operand (SMEM).
    task = jnp.asarray(active_task, dtype=jnp.int32).reshape(1)

    grid = (N // bn, C // c_t, H // h_t)

    return pl.pallas_call(
        mr_kernel,
        out_shape=jax.ShapeDtypeStruct((N, C, H, W), x.dtype),
        grid_spec=pltpu.PrefetchScalarGridSpec(
            num_scalar_prefetch=1,
            grid=grid,
            in_specs=[
                # x: tiled over batch, channel and (rarely) spatial rows.
                pl.BlockSpec((bn, c_t, h_t, W),
                             lambda i, j, k, t_ref: (i, j, k, 0)),
                # mask: the active task's row block, picked by the prefetched
                # task index; constant along i/k so it stays VMEM-resident.
                pl.BlockSpec((1, c_t, 1, 1),
                             lambda i, j, k, t_ref: (t_ref[0], j, 0, 0)),
            ],
            out_specs=pl.BlockSpec((bn, c_t, h_t, W),
                                   lambda i, j, k, t_ref: (i, j, k, 0)),
        ),
        compiler_params=pltpu.CompilerParams(
            dimension_semantics=("parallel", "parallel", "parallel"),
            vmem_limit_bytes=vmem_limit,
        ),
    )(task, x, mapping4d)


# ---------------------------------------------------------------------------
if __name__ == "__main__":
    # Module config: unit_count (=C) = 4, task_count = 2, sigma = 0.5,
    # active_task = 0.  With these values the mapping construction is fully
    # deterministic: unit_mapping = [[1,0,1,0],[0,1,0,1]].
    unit_count, task_count, sigma, active_task = 4, 2, 0.5, 0

    unit_mapping_np = build_unit_mapping(unit_count, task_count, sigma)
    unit_mapping = jnp.asarray(unit_mapping_np)

    # Input: NCHW, batch=2, channels=4, spatial=16x16
    key = jax.random.PRNGKey(0)
    x = jax.random.normal(key, (2, unit_count, 16, 16), dtype=jnp.float32)

    out = mr_forward(x, unit_mapping, active_task)
    out = jax.block_until_ready(out)

    # Reference check (pure JAX, same semantics as the PyTorch forward)
    ref = x * unit_mapping[active_task].reshape(1, unit_count, 1, 1)
    assert out.shape == x.shape and out.dtype == x.dtype
    np.testing.assert_allclose(np.asarray(out), np.asarray(ref), rtol=0, atol=0)

    print("KERNEL_OK")
</pallas_src>

<mosaic_0001>
module attributes {stable_mosaic.version = 11 : i64} {
  func.func @mr_kernel(%arg0: i32, %arg1: i32, %arg2: i32, %arg3: memref<1xi32, #tpu.memory_space<smem>>, %arg4: memref<1x4x16x16xf32, #tpu.memory_space<vmem>>, %arg5: memref<1x4x1x1xf32, #tpu.memory_space<vmem>>, %arg6: memref<1x4x16x16xf32, #tpu.memory_space<vmem>>) attributes {dimension_semantics = [#tpu.dimension_semantics<parallel>, #tpu.dimension_semantics<parallel>, #tpu.dimension_semantics<parallel>], iteration_bounds = array<i64: 2, 1, 1>, scalar_prefetch = 1 : i64, scratch_operands = 0 : i64, tpu.core_type = #tpu.core_type<tc>, window_params = [{transform_indices = @transform_0, window_bounds = array<i64: 1, 4, 16, 16>}, {transform_indices = @transform_1, window_bounds = array<i64: 1, 4, 1, 1>}, {transform_indices = @transform_2, window_bounds = array<i64: 1, 4, 16, 16>}]} {
    %c0 = arith.constant 0 : index
    %c0_0 = arith.constant 0 : index
    %c0_1 = arith.constant 0 : index
    %c0_2 = arith.constant 0 : index
    %0 = vector.load %arg4[%c0, %c0_0, %c0_1, %c0_2] : memref<1x4x16x16xf32, #tpu.memory_space<vmem>>, vector<1x4x16x16xf32>
    %c0_3 = arith.constant 0 : index
    %c0_4 = arith.constant 0 : index
    %c0_5 = arith.constant 0 : index
    %c0_6 = arith.constant 0 : index
    %1 = vector.load %arg5[%c0_3, %c0_4, %c0_5, %c0_6] : memref<1x4x1x1xf32, #tpu.memory_space<vmem>>, vector<1x4x1x1xf32>
    %2 = vector.broadcast %1 : vector<1x4x1x1xf32> to vector<1x4x16x16xf32>
    %3 = arith.mulf %0, %2 : vector<1x4x16x16xf32>
    %c0_7 = arith.constant 0 : index
    %c0_8 = arith.constant 0 : index
    %c0_9 = arith.constant 0 : index
    %c0_10 = arith.constant 0 : index
    %4 = vector.load %arg6[%c0_7, %c0_8, %c0_9, %c0_10] : memref<1x4x16x16xf32, #tpu.memory_space<vmem>>, vector<1x4x16x16xf32>
    tpu.vector_store %arg6[%c0_7, %c0_8, %c0_9, %c0_10], %3 {strides = array<i32>} : memref<1x4x16x16xf32, #tpu.memory_space<vmem>>, vector<1x4x16x16xf32>,
    return
  }
  func.func @transform_0(%arg0: i32, %arg1: i32, %arg2: i32, %arg3: memref<1xi32, #tpu.memory_space<smem>>) -> (i32, i32, i32, i32) {
    %c0_i32 = arith.constant 0 : i32
    %c0_i32_0 = arith.constant 0 : i32
    return %arg0, %arg1, %arg2, %c0_i32 : i32, i32, i32, i32
  }
  func.func @transform_1(%arg0: i32, %arg1: i32, %arg2: i32, %arg3: memref<1xi32, #tpu.memory_space<smem>>) -> (i32, i32, i32, i32) {
    %c0 = arith.constant 0 : index
    %0 = memref.load %arg3[%c0] : memref<1xi32, #tpu.memory_space<smem>>
    %c0_i32 = arith.constant 0 : i32
    %c0_i32_0 = arith.constant 0 : i32
    %c0_i32_1 = arith.constant 0 : i32
    return %0, %arg1, %c0_i32, %c0_i32_0 : i32, i32, i32, i32
  }
  func.func @transform_2(%arg0: i32, %arg1: i32, %arg2: i32, %arg3: memref<1xi32, #tpu.memory_space<smem>>) -> (i32, i32, i32, i32) {
    %c0_i32 = arith.constant 0 : i32
    %c0_i32_0 = arith.constant 0 : i32
    return %arg0, %arg1, %arg2, %c0_i32 : i32, i32, i32, i32
  }
}

</mosaic_0001>

<llo_original>
// kernel: mr_forward.1
$region0: #{mr_forward.1}
  #allocation0 [shape = 'u32[]', space=smem, size = 0x4, offset = 0x4, fixed_abs, tag = 'smem constant byte address 0x4 - core index']
  #allocation1 [shape = 'u32[144,128]{1,0:T(1,128)}', space=vmem, size = 0x12000, scoped, tag = 'internal scratch']
  #allocation2 [shape = 's32[1]{0}', space=sflag, size = 0x4, scoped, tag = 'scoped memory for mr_forward.1']
  #allocation3 [shape = 's32[1]{0:T(128)S(6)}', space=smem, size = 0x200, scoped, tag = 'prefetched SMEM operand 0']
  %s0 = inlined_call_operand.<no memory space> [shape: s32[1], index: 0, kind: input, shape index: {}]
  %s1 = inlined_call_operand.hbm [shape: f32[2,4,16,16], index: 1, kind: input, shape index: {}]
  %s2 = inlined_call_operand.vmem [shape: f32[2,4,1,1], index: 2, kind: input, shape index: {}]
  %s3 = inlined_call_operand.hbm [shape: f32[2,4,16,16], index: 3, kind: output, shape index: {}]
  %s4 = sld [smem:[#allocation0]]
  $region45: #{mr_forward.1} parent=0
    _
  %s6 = ssub.s32 1, %s4
  %s7 = scalar_select 0, %s6, %s4
  %8 = sst [smem:[#allocation3]] %s0
  $region1: #{mr_forward.1} parent=0
    #allocation4 [shape = 'u8[65536]{0}', space=vmem, size = 0x10000, scoped, tag = 'input window, operand 1']
    #allocation5 [shape = 's32[2]{0}', space=sflag, size = 0x8, scoped, tag = 'scoped memory for mr_forward.1']
    #allocation6 [shape = 's32[2]{0}', space=sflag, size = 0x8, scoped, tag = 'scoped memory for mr_forward.1']
    #allocation7 [shape = 'u8[65536]{0}', space=vmem, size = 0x10000, scoped, tag = 'output window, operand 0']
    %9 = vsyncpa [#allocation5], 0
    %s10 = scalar_lea.sflag [#allocation5], 1
    %11 = vsyncpa %s10, 0
    %12 = vsyncpa [#allocation6], 0
    %s13 = scalar_lea.sflag [#allocation6], 1
    %14 = vsyncpa %s13, 0
    loop: start=0, step=1, limit=4
    $region2: #{mr_forward.1} parent=1 // loop_pre_header
      _
    $region3: #{mr_forward.1} parent=1 // loop_header
      %s16 = sphi 0, %s20
      %p17 = scmp.ge.s32.totalorder %s16, 4
      %s23 = sphi 0, %s42
      %s24 = sphi 0, %s38
      %s25 = sphi 0, %s34
      %s26 = sphi 0, %s23
      %s27 = sphi 0, %s24
      %s28 = sphi 0, %s25
      %s29 = sphi 0, %s26
      %s30 = sphi 0, %s27
      %s31 = sphi 0, %s28
      %s49 = sphi 0, %s51
      %s52 = sphi 0, %s49
      %s53 = sphi 0, %s52
      %s69 = sphi 0, %s53
      %s79 = sphi 0, %s81
      %s82 = sphi 0, %s79
      %s83 = sphi 0, %s82
      %s99 = sphi 0, %s83
      %s109 = sphi 0, %s111
      %s112 = sphi 0, %s109
      %s113 = sphi 0, %s112
      %s129 = sphi 0, %s113
    $region4: #{mr_forward.1} parent=1 // loop_header_branch
      %19 = sbr.rel (%p17) target = $region8
    $region5: #{mr_forward.1} parent=1 // loop_body
      %s21 = ssub.s32 %s16, 1
      %s22 = ssub.s32 %s16, 2
      %s32 = sadd.s32 1, %s25
      %p33 = scmp.ge.s32.totalorder %s32, 1
      %s34 = scalar_select %p33, 0, %s32
      %s35 = sadd.s32 1, %s24
      %s36 = scalar_select %p33, %s35, %s24
      %p37 = scmp.ge.s32.totalorder %s36, 1
      %s38 = scalar_select %p37, 0, %s36
      %s39 = sadd.s32 1, %s23
      %s40 = scalar_select %p37, %s39, %s23
      %p41 = scmp.ge.s32.totalorder %s40, 2
      %s42 = scalar_select %p41, 0, %s40
      %s43 = ssub.s32 %s23, %s42
      %s44 = ssub.s32 %s24, %s38
      %s45 = sor.u32 %s43, %s44
      %s46 = ssub.s32 %s25, %s34
      %s47 = sor.u32 %s45, %s46
      %p48 = scmp.eq.s32.totalorder %s47, 0
      %s50 = sadd.s32 %s49, 1
      %s51 = scalar_select %p48, %s49, %s50
      %p54 = pneg %p48
      %p55 = scmp.eq.s32.totalorder %s16, 1
      %p56 = por %p54, %p55
      %p57 = scmp.ne.s32.totalorder %s49, %s52
      %p58 = scmp.eq.s32.totalorder %s16, 0
      %p59 = por %p57, %p58
      %p60 = scmp.ne.s32.totalorder %s49, %s52
      %p61 = scmp.eq.s32.totalorder %s21, 1
      %p62 = por %p60, %p61
      %p63 = scmp.ne.s32.totalorder %s52, %s53
      %p64 = scmp.eq.s32.totalorder %s21, 0
      %p65 = por %p63, %p64
      %p66 = scmp.ne.s32.totalorder %s52, %s53
      %p67 = scmp.eq.s32.totalorder %s22, 1
      %p68 = por %p66, %p67
      %p70 = scmp.ne.s32.totalorder %s53, %s69
      %p71 = scmp.eq.s32.totalorder %s22, 0
      %p72 = por %p70, %p71
      %s73 = sld [smem:[#allocation3]]
      %s74 = sld [smem:[#allocation3]]
      %s75 = ssub.s32 %s73, %s74
      %s76 = ssub.s32 %s24, %s38
      %s77 = sor.u32 %s75, %s76
      %p78 = scmp.eq.s32.totalorder %s77, 0
      %s80 = sadd.s32 %s79, 1
      %s81 = scalar_select %p78, %s79, %s80
      %p84 = pneg %p78
      %p85 = scmp.eq.s32.totalorder %s16, 1
      %p86 = por %p84, %p85
      %p87 = scmp.ne.s32.totalorder %s79, %s82
      %p88 = scmp.eq.s32.totalorder %s16, 0
      %p89 = por %p87, %p88
      %p90 = scmp.ne.s32.totalorder %s79, %s82
      %p91 = scmp.eq.s32.totalorder %s21, 1
      %p92 = por %p90, %p91
      %p93 = scmp.ne.s32.totalorder %s82, %s83
      %p94 = scmp.eq.s32.totalorder %s21, 0
      %p95 = por %p93, %p94
      %p96 = scmp.ne.s32.totalorder %s82, %s83
      %p97 = scmp.eq.s32.totalorder %s22, 1
      %p98 = por %p96, %p97
      %p100 = scmp.ne.s32.totalorder %s83, %s99
      %p101 = scmp.eq.s32.totalorder %s22, 0
      %p102 = por %p100, %p101
      %s103 = ssub.s32 %s23, %s42
      %s104 = ssub.s32 %s24, %s38
      %s105 = sor.u32 %s103, %s104
      %s106 = ssub.s32 %s25, %s34
      %s107 = sor.u32 %s105, %s106
      %p108 = scmp.eq.s32.totalorder %s107, 0
      %s110 = sadd.s32 %s109, 1
      %s111 = scalar_select %p108, %s109, %s110
      %p114 = pneg %p108
      %p115 = scmp.eq.s32.totalorder %s16, 1
      %p116 = por %p114, %p115
      %p117 = scmp.ne.s32.totalorder %s109, %s112
      %p118 = scmp.eq.s32.totalorder %s16, 0
      %p119 = por %p117, %p118
      %p120 = scmp.ne.s32.totalorder %s109, %s112
      %p121 = scmp.eq.s32.totalorder %s21, 1
      %p122 = por %p120, %p121
      %p123 = scmp.ne.s32.totalorder %s112, %s113
      %p124 = scmp.eq.s32.totalorder %s21, 0
      %p125 = por %p123, %p124
      %p126 = scmp.ne.s32.totalorder %s112, %s113
      %p127 = scmp.eq.s32.totalorder %s22, 1
      %p128 = por %p126, %p127
      %p130 = scmp.ne.s32.totalorder %s113, %s129
      %p131 = scmp.eq.s32.totalorder %s22, 0
      %p132 = por %p130, %p131
      %p133 = scmp.le.s32.totalorder 1, %s16
      %p134 = scmp.lt.s32.totalorder %s16, 3
      %p135 = pnand %p133, %p134
      %p136 = pneg %p135
      // Predicated region
      $region9: #{mr_forward.1} parent=5 // pred_check
        _
      $region10: #{mr_forward.1} parent=5 // pred_check_branch
        %138 = sbr.rel (%p135) target = $region12
      $region11: #{mr_forward.1} parent=5 // pred_region
        %s139 = ssub.s32 %s16, 1
        // Predicated region
        $region13: #{mr_forward.1} parent=11 // pred_check
          %p140 = pneg %p95
        $region14: #{mr_forward.1} parent=11 // pred_check_branch
          %142 = sbr.rel (%p140) target = $region16
        $region15: #{mr_forward.1} parent=11 // pred_region
          %s143 = sld [smem:[#allocation3]]
          %s144 = smul.u32 4, %s27
          %p145 = scmp.lt.s32.totalorder %s143, 1
          %s146 = scalar_select %p145, %s143, 1
          %p147 = scmp.lt.s32.totalorder %s144, 3
          %s148 = scalar_select %p147, %s144, 3
          %s149 = smul.addr %s146, 4
          %s150 = sadd.s32 %s148, %s149
          %s151 = scalar_lea.vmem %s2, %s150
          %s152 = sld [smem:[#allocation3]]
          %s153 = smul.u32 4, %s27
        $region16: #{mr_forward.1} parent=11 // pred_fallthru
          _
      $region12: #{mr_forward.1} parent=5 // pred_fallthru
        _
      %p154 = scmp.lt.s32.totalorder %s16, 2
      // Predicated region
      $region17: #{mr_forward.1} parent=5 // pred_check
        %p155 = pneg %p154
      $region18: #{mr_forward.1} parent=5 // pred_check_branch
        %157 = sbr.rel (%p155) target = $region20
      $region19: #{mr_forward.1} parent=5 // pred_region
        // Predicated region
        $region21: #{mr_forward.1} parent=19 // pred_check
          %p158 = pneg %p59
        $region22: #{mr_forward.1} parent=19 // pred_check_branch
          %160 = sbr.rel (%p158) target = $region24
        $region23: #{mr_forward.1} parent=19 // pred_region
          %s161 = sand.u32 %s49, 1
          %s162 = scalar_lea.sflag [#allocation5], %s161
          %s163 = sand.u32 %s49, 1
          %s164 = smul.addr %s163, 64
          %s165 = scalar_lea.vmem [#allocation4], %s164
          %s166 = smul.u32 4, %s24
          %s167 = smul.u32 2, %s25
          %s169 = ssub.s32 1024, 1024
          %170 = vsyncadd %s162, %s169
          %s171 = smul.addr %s166, 2
          %s172 = sadd.s32 %s167, %s171
          %s173 = smul.addr %s23, 8
          %s174 = sadd.s32 %s172, %s173
          %s175 = smul.addr %s174, 128
          %s176 = scalar_lea.hbm %s1, %s175
          %s177 = sshll.u32 %s165, 4
          %s178 = int_to_ptr.vmem [resolvable:$true] %s177
          %183 = dma.hbm_to_vmem [thread:$0]  %s176, 1024, %s178, %s162, 128, 128, 8
        $region24: #{mr_forward.1} parent=19 // pred_fallthru
          _
      $region20: #{mr_forward.1} parent=5 // pred_fallthru
        _
      %p184 = scmp.le.s32.totalorder 1, %s16
      %p185 = scmp.lt.s32.totalorder %s16, 3
      %p186 = pnand %p184, %p185
      %p187 = pneg %p186
      // Predicated region
      $region25: #{mr_forward.1} parent=5 // pred_check
        _
      $region26: #{mr_forward.1} parent=5 // pred_check_branch
        %189 = sbr.rel (%p186) target = $region28
      $region27: #{mr_forward.1} parent=5 // pred_region
        %s190 = ssub.s32 %s16, 1
        %s191 = sand.u32 %s52, 1
        %s192 = scalar_lea.sflag [#allocation5], %s191
        %s193 = sand.u32 %s52, 1
        %s194 = smul.addr %s193, 64
        %s195 = scalar_lea.vmem [#allocation4], %s194
        // Predicated region
        $region29: #{mr_forward.1} parent=27 // pred_check
          %p196 = pneg %p65
        $region30: #{mr_forward.1} parent=27 // pred_check_branch
          %198 = sbr.rel (%p196) target = $region32
        $region31: #{mr_forward.1} parent=27 // pred_region
          %199 = dma.done %s192, 1024
        $region32: #{mr_forward.1} parent=27 // pred_fallthru
          _
        %s200 = sand.u32 %s52, 1
        %s201 = scalar_lea.sflag [#allocation5], %s200
        %s202 = sand.u32 %s52, 1
        %s203 = smul.addr %s202, 64
        %s204 = scalar_lea.vmem [#allocation4], %s203
        %p205 = pneg %p65
        %p206 = pneg %p62
        %s207 = sld [smem:[#allocation3]]
        %s208 = smul.u32 4, %s27
        %p209 = scmp.lt.s32.totalorder %s207, 1
        %s210 = scalar_select %p209, %s207, 1
        %p211 = scmp.lt.s32.totalorder %s208, 3
        %s212 = scalar_select %p211, %s208, 3
        %s213 = smul.addr %s210, 4
        %s214 = sadd.s32 %s212, %s213
        %s215 = scalar_lea.vmem %s2, %s214
        %p216 = pneg %p95
        %p217 = pneg %p92
        %p218 = pneg %p125
        %p219 = pneg %p122
        %s220 = sand.u32 %s112, 1
        %s221 = scalar_lea.sflag [#allocation6], %s220
        %s222 = sand.u32 %s112, 1
        %s223 = smul.addr %s222, 64
        %s224 = scalar_lea.vmem [#allocation7], %s223
        %s225 = smul.u32 4, %s27
        %s226 = smul.u32 2, %s28
        %s227 = sld [smem:[#allocation3]]
        %s228 = smul.u32 4, %s27
        %p229 = scmp.lt.s32.totalorder %s227, 1
        %s230 = scalar_select %p229, %s227, 1
        %p231 = scmp.lt.s32.totalorder %s228, 3
        %s232 = scalar_select %p231, %s228, 3
        %s233 = smul.addr %s230, 4
        %s234 = sadd.s32 %s232, %s233
        %s235 = scalar_lea.vmem %s2, %s234
        %s236 = sld [smem:[#allocation3]]
        %s237 = smul.u32 4, %s27
        %s238 = smul.u32 4, %s27
        %s239 = smul.u32 2, %s28
        %v240 = vld [vmem:[%s195] sm:$0xff]
        %v241 = vld [vmem:[%s195 + $0x8] sm:$0xff]
        %v242 = vld [vmem:[%s195 + $0x10] sm:$0xff]
        %v243 = vld [vmem:[%s195 + $0x18] sm:$0xff]
        %v244 = vld [vmem:[%s195 + $0x20] sm:$0xff]
        %v245 = vld [vmem:[%s195 + $0x28] sm:$0xff]
        %v246 = vld [vmem:[%s195 + $0x30] sm:$0xff]
        %v247 = vld [vmem:[%s195 + $0x38] sm:$0xff]
        %v248 = vld [vmem:[%s235] sm:$0x1]
        %v249 = vld [vmem:[%s235 + $0x1] sm:$0x1]
        %v250 = vld [vmem:[%s235 + $0x2] sm:$0x1]
        %v251 = vld [vmem:[%s235 + $0x3] sm:$0x1]
        %v256 = vlaneseq
        %v257 = vshrl.u32 %v256, 7
        %v258 = vsub.s32 0, %v257
        %v259 = vrot.slane %v248, %v258
        %v260 = vlaneseq
        %v261 = vshrl.u32 %v260, 7
        %v262 = vsub.s32 0, %v261
        %v263 = vrot.slane %v249, %v262
        %v264 = vlaneseq
        %v265 = vshrl.u32 %v264, 7
        %v266 = vsub.s32 0, %v265
        %v267 = vrot.slane %v250, %v266
        %v268 = vlaneseq
        %v269 = vshrl.u32 %v268, 7
        %v270 = vsub.s32 0, %v269
        %v271 = vrot.slane %v251, %v270
        %272 = vset.pattern.permute.xlu0 0
        %273 = vperm.xlu0 %272, %v259
        %v274 = vpop.permute.xlu0 %273
        %276 = vset.pattern.permute.xlu0 0
        %277 = vperm.xlu0 %276, %v263
        %v278 = vpop.permute.xlu0 %277
        %280 = vset.pattern.permute.xlu0 0
        %281 = vperm.xlu0 %280, %v267
        %v282 = vpop.permute.xlu0 %281
        %284 = vset.pattern.permute.xlu0 0
        %285 = vperm.xlu0 %284, %v271
        %v286 = vpop.permute.xlu0 %285
        %v288 = vmul.f32 %v240, %v274
        %v289 = vmul.f32 %v241, %v274
        %v290 = vmul.f32 %v242, %v278
        %v291 = vmul.f32 %v243, %v278
        %v292 = vmul.f32 %v244, %v282
        %v293 = vmul.f32 %v245, %v282
        %v294 = vmul.f32 %v246, %v286
        %v295 = vmul.f32 %v247, %v286
        %vm296 = vcmask 130048
        %297 = vst.msk [vmem:[%s224] sm:$0xff] %vm296, %v288
        %298 = vst.msk [vmem:[%s224 + $0x8] sm:$0xff] %vm296, %v289
        %299 = vst.msk [vmem:[%s224 + $0x10] sm:$0xff] %vm296, %v290
        %300 = vst.msk [vmem:[%s224 + $0x18] sm:$0xff] %vm296, %v291
        %301 = vst.msk [vmem:[%s224 + $0x20] sm:$0xff] %vm296, %v292
        %302 = vst.msk [vmem:[%s224 + $0x28] sm:$0xff] %vm296, %v293
        %303 = vst.msk [vmem:[%s224 + $0x30] sm:$0xff] %vm296, %v294
        %304 = vst.msk [vmem:[%s224 + $0x38] sm:$0xff] %vm296, %v295
        %s305 = sand.u32 %s112, 1
        %s306 = scalar_lea.sflag [#allocation6], %s305
        %s307 = sand.u32 %s112, 1
        %s308 = smul.addr %s307, 64
        %s309 = scalar_lea.vmem [#allocation7], %s308
        // Predicated region
        $region33: #{mr_forward.1} parent=27 // pred_check
          %p310 = pneg %p122
        $region34: #{mr_forward.1} parent=27 // pred_check_branch
          %312 = sbr.rel (%p310) target = $region36
        $region35: #{mr_forward.1} parent=27 // pred_region
          %s313 = smul.u32 4, %s27
          %s314 = smul.u32 2, %s28
          %s316 = ssub.s32 1024, 1024
          %317 = vsyncadd %s306, %s316
          %s318 = smul.addr %s313, 2
          %s319 = sadd.s32 %s314, %s318
          %s320 = smul.addr %s26, 8
          %s321 = sadd.s32 %s319, %s320
          %s322 = smul.addr %s321, 128
          %s323 = scalar_lea.hbm %s3, %s322
          %s324 = sshll.u32 %s309, 4
          %s325 = int_to_ptr.vmem [resolvable:$true] %s324
          %330 = dma.vmem_to_hbm [thread:$0]  %s325, 1024, %s323, %s306, 128, 128, 8
        $region36: #{mr_forward.1} parent=27 // pred_fallthru
          _
      $region28: #{mr_forward.1} parent=5 // pred_fallthru
        _
      %p331 = scmp.le.s32.totalorder 2, %s16
      // Predicated region
      $region37: #{mr_forward.1} parent=5 // pred_check
        %p332 = pneg %p331
      $region38: #{mr_forward.1} parent=5 // pred_check_branch
        %334 = sbr.rel (%p332) target = $region40
      $region39: #{mr_forward.1} parent=5 // pred_region
        %s335 = ssub.s32 %s16, 2
        // Predicated region
        $region41: #{mr_forward.1} parent=39 // pred_check
          %p336 = pneg %p128
        $region42: #{mr_forward.1} parent=39 // pred_check_branch
          %338 = sbr.rel (%p336) target = $region44
        $region43: #{mr_forward.1} parent=39 // pred_region
          %s339 = sand.u32 %s113, 1
          %s340 = scalar_lea.sflag [#allocation6], %s339
          %s341 = sand.u32 %s113, 1
          %s342 = smul.addr %s341, 64
          %s343 = scalar_lea.vmem [#allocation7], %s342
          %344 = dma.done %s340, 1024
        $region44: #{mr_forward.1} parent=39 // pred_fallthru
          _
      $region40: #{mr_forward.1} parent=5 // pred_fallthru
        _
    $region6: #{mr_forward.1} parent=1 // loop_footer
      %s20 = sadd.s32 1, %s16
    $region7: #{mr_forward.1} parent=1 // loop_footer_branch
      %15 = sbr.rel target = $region3
    $region8: #{mr_forward.1} parent=1 // loop_exit
      _
    %345 = vsyncpa [#allocation5], 1
    %s346 = scalar_lea.sflag [#allocation5], 1
    %347 = vsyncpa %s346, 1
    %348 = vsyncpa [#allocation6], 1
    %s349 = scalar_lea.sflag [#allocation6], 1
    %350 = vsyncpa %s349, 1

</llo_original>
